<compile_context>
chip_gen: v5e
topology: v5e:2x2
jax: 0.10.0
libtpu: 0.0.40
codegen_flags: <defaults>
</compile_context>

<pallas_src>
from functools import partial

import jax
import jax.numpy as jnp
from jax.experimental import pallas as pl
from jax.experimental.pallas import tpu as pltpu


def fcn_kernel(x_ref,             # (in_dim, tb)  features on sublanes, batch on lanes
               w12_ref, b12_ref,  # (32, in_dim), (32, 1)
               w3_ref, b3_ref,    # (16, 32),     (16, 1)
               w4_ref, b4_ref,    # (1, 16),      (1, 1)
               o_ref):            # (1, tb)
    cdt = w12_ref.dtype  # storage dtype of weights & activations (f32 or bf16)

    # Folded Linear(3,16)+Linear(16,32), then ReLU.
    h = jnp.dot(w12_ref[...], x_ref[...], preferred_element_type=jnp.float32)
    h = jnp.maximum(h + b12_ref[...], 0.0)

    # Linear(32,16) + ReLU.
    h = jnp.dot(w3_ref[...], h.astype(cdt), preferred_element_type=jnp.float32)
    h = jnp.maximum(h + b3_ref[...], 0.0)

    # Linear(16,1) -- lane-dense (1, tb) result in this layout.
    y = jnp.dot(w4_ref[...], h.astype(cdt), preferred_element_type=jnp.float32)
    o_ref[...] = (y + b4_ref[...]).astype(o_ref.dtype)


def _pick_tb(B, *, max_tb=32768, min_steps=1):
    """Pick a lane-aligned batch tile.

    - Non-lane-aligned or small batches: one full-extent block (extra grid steps
      on single-TensorCore v5e/v6e are pure ~0.35us overhead, nothing to overlap).
    - Large batches: largest tile <= max_tb (32K keeps per-step VMEM ~7 MiB in f32,
      under every generation's default scoped-VMEM limit).
    - min_steps=2 is the v7x knob: guarantees >= 2 grid steps so the "parallel"
      axis can load-balance across its two TensorCores.
    """
    if B % 128 != 0:
        return B                       # full-extent block (allowed by the (8,128) rule)
    if min_steps <= 1 and B <= max_tb:
        return B                       # single big lane-dense block, zero extra steps
    tb = 128
    for cand in (32768, 16384, 8192, 4096, 2048, 1024, 512, 256, 128):
        if cand <= max_tb and B % cand == 0 and B // cand >= min_steps:
            tb = cand
            break
    return tb


def fold_params(params, *, compute_dtype=jnp.float32):
    """Fold Linear1+Linear2 (no activation between them) and pre-cast ONCE.

    Hoisted out of the per-call path per review. compute_dtype=jnp.bfloat16 halves
    the dominant x/weight HBM streams on v6e/v7x; biases & accumulation stay f32.
    Validate accuracy before enabling bf16 by default.
    """
    (w1, b1), (w2, b2), (w3, b3), (w4, b4) = params
    w12 = (w2 @ w1).astype(compute_dtype)                        # (32, in_dim)
    b12 = (w2 @ b1 + b2).reshape(-1, 1).astype(jnp.float32)      # (32, 1)
    return (w12, b12,
            w3.astype(compute_dtype), b3.reshape(-1, 1).astype(jnp.float32),
            w4.astype(compute_dtype), b4.reshape(-1, 1).astype(jnp.float32))


@partial(jax.jit, static_argnames=("tb", "min_steps"))
def fcn_apply(x, folded, *, tb=None, min_steps=1):
    """x: (B, input_dim). folded: output of fold_params(). Returns (B, 1) f32."""
    w12, b12, w3c, b3c, w4c, b4c = folded
    B, in_dim = x.shape
    out_dim = w4c.shape[0]
    h1, h2 = w12.shape[0], w3c.shape[0]

    if tb is None:
        tb = _pick_tb(B, min_steps=min_steps)
    assert B % tb == 0, "batch must be divisible by the batch tile"
    assert tb == B or tb % 128 == 0, "tb must be a multiple of 128 (or the full batch)"
    grid = (B // tb,)

    # (features, batch): lane-dense input and output tiles.  Under jit with
    # allow_input_fusion on operand 0, XLA may fuse this transpose into the
    # pallas_call operand instead of materializing an extra HBM copy of x.
    x_t = x.T.astype(w12.dtype)                                  # (in_dim, B)

    def full_spec(arr):
        return pl.BlockSpec(arr.shape, lambda i: (0, 0))

    bpe = jnp.dtype(w12.dtype).itemsize
    cost = pl.CostEstimate(
        flops=2 * B * (in_dim * h1 + h1 * h2 + h2 * out_dim),
        transcendentals=0,
        bytes_accessed=B * in_dim * bpe + B * out_dim * 4
        + sum(a.size * a.dtype.itemsize for a in folded),
    )

    out_t = pl.pallas_call(
        fcn_kernel,
        out_shape=jax.ShapeDtypeStruct((out_dim, B), jnp.float32),
        grid_spec=pltpu.PrefetchScalarGridSpec(
            num_scalar_prefetch=0,
            grid=grid,
            in_specs=[
                pl.BlockSpec((in_dim, tb), lambda i: (0, i)),    # x tile, lane-dense
                full_spec(w12), full_spec(b12),
                full_spec(w3c), full_spec(b3c),
                full_spec(w4c), full_spec(b4c),
            ],
            out_specs=pl.BlockSpec((out_dim, tb), lambda i: (0, i)),  # lane-dense out
        ),
        compiler_params=pltpu.CompilerParams(
            dimension_semantics=("parallel",),
            # Allow XLA to fuse the producer (the transpose/cast) into the x operand.
            allow_input_fusion=[True, False, False, False, False, False, False],
        ),
        cost_estimate=cost,
    )(x_t, w12, b12, w3c, b3c, w4c, b4c)

    return out_t.T  # (1,B) -> (B,1): degenerate-dim transpose, effectively free


def fcn_forward(x, params, *, tb=None, min_steps=1, compute_dtype=jnp.float32):
    """Convenience wrapper: fold + apply.  Prefer fold_params()+fcn_apply() in a loop."""
    return fcn_apply(x, fold_params(params, compute_dtype=compute_dtype),
                     tb=tb, min_steps=min_steps)


def init_params(key, input_dim=3, hidden_layers=(16, 32, 16), output_dim=1):
    """nn.Linear-style init, torch layout: W (out,in), b (out,), U(-1/sqrt(fan_in), ...)."""
    dims = [input_dim] + list(hidden_layers) + [output_dim]
    params = []
    for i in range(len(dims) - 1):
        fan_in, fan_out = dims[i], dims[i + 1]
        key, kw, kb = jax.random.split(key, 3)
        bound = 1.0 / jnp.sqrt(fan_in)
        w = jax.random.uniform(kw, (fan_out, fan_in), jnp.float32, -bound, bound)
        b = jax.random.uniform(kb, (fan_out,), jnp.float32, -bound, bound)
        params.append((w, b))
    return params


def fcn_reference(x, params):
    (w1, b1), (w2, b2), (w3, b3), (w4, b4) = params
    h = x @ w1.T + b1                       # Linear(3,16)   (no ReLU, matches module)
    h = jnp.maximum(h @ w2.T + b2, 0.0)     # Linear(16,32) + ReLU
    h = jnp.maximum(h @ w3.T + b3, 0.0)     # Linear(32,16) + ReLU
    return h @ w4.T + b4                    # Linear(16,1)


if __name__ == "__main__":
    key = jax.random.PRNGKey(0)
    key, kx = jax.random.split(key)

    batch, input_dim = 256, 3
    x = jax.random.normal(kx, (batch, input_dim), jnp.float32)
    params = init_params(key, input_dim=input_dim,
                         hidden_layers=(16, 32, 16), output_dim=1)

    folded = fold_params(params)            # weight fold hoisted: done once, not per call

    # Small batch -> single full-extent lane-dense block (no redundant grid steps).
    out = jax.block_until_ready(fcn_apply(x, folded))
    ref = fcn_reference(x, params)
    assert out.shape == (batch, 1)
    assert jnp.allclose(out, ref, atol=1e-4, rtol=1e-4), "mismatch (single-block path)"

    # Also exercise the tiled, double-buffered multi-step path (still small shapes).
    key, kx2 = jax.random.split(key)
    x2 = jax.random.normal(kx2, (512, input_dim), jnp.float32)
    out2 = jax.block_until_ready(fcn_apply(x2, folded, tb=128))   # 4 grid steps
    assert jnp.allclose(out2, fcn_reference(x2, params), atol=1e-4, rtol=1e-4), \
        "mismatch (tiled path)"

    print("KERNEL_OK")
</pallas_src>

<mosaic_0001>
module attributes {stable_mosaic.version = 11 : i64} {
  func.func @fcn_kernel(%arg0: i32, %arg1: memref<3x256xf32, #tpu.memory_space<vmem>>, %arg2: memref<32x3xf32, #tpu.memory_space<vmem>>, %arg3: memref<32x1xf32, #tpu.memory_space<vmem>>, %arg4: memref<16x32xf32, #tpu.memory_space<vmem>>, %arg5: memref<16x1xf32, #tpu.memory_space<vmem>>, %arg6: memref<1x16xf32, #tpu.memory_space<vmem>>, %arg7: memref<1x1xf32, #tpu.memory_space<vmem>>, %arg8: memref<1x256xf32, #tpu.memory_space<vmem>>) attributes {dimension_semantics = [#tpu.dimension_semantics<parallel>], iteration_bounds = array<i64: 1>, scalar_prefetch = 0 : i64, scratch_operands = 0 : i64, tpu.core_type = #tpu.core_type<tc>, window_params = [{transform_indices = @transform_0, window_bounds = array<i64: 3, 256>}, {pipeline_mode = #tpu.pipeline_mode<synchronous>, transform_indices = @transform_1, window_bounds = array<i64: 32, 3>}, {pipeline_mode = #tpu.pipeline_mode<synchronous>, transform_indices = @transform_2, window_bounds = array<i64: 32, 1>}, {pipeline_mode = #tpu.pipeline_mode<synchronous>, transform_indices = @transform_3, window_bounds = array<i64: 16, 32>}, {pipeline_mode = #tpu.pipeline_mode<synchronous>, transform_indices = @transform_4, window_bounds = array<i64: 16, 1>}, {pipeline_mode = #tpu.pipeline_mode<synchronous>, transform_indices = @transform_5, window_bounds = array<i64: 1, 16>}, {pipeline_mode = #tpu.pipeline_mode<synchronous>, transform_indices = @transform_6, window_bounds = array<i64: 1, 1>}, {transform_indices = @transform_7, window_bounds = array<i64: 1, 256>}]} {
    %c0 = arith.constant 0 : index
    %c0_0 = arith.constant 0 : index
    %0 = vector.load %arg2[%c0, %c0_0] : memref<32x3xf32, #tpu.memory_space<vmem>>, vector<32x3xf32>
    %c0_1 = arith.constant 0 : index
    %c0_2 = arith.constant 0 : index
    %1 = vector.load %arg1[%c0_1, %c0_2] : memref<3x256xf32, #tpu.memory_space<vmem>>, vector<3x256xf32>
    %cst = arith.constant dense<0.000000e+00> : vector<32x256xf32>
    %2 = tpu.matmul %0, %1, %cst {dimension_numbers = #tpu.dot_dimension_numbers<[1], [0], [0], [1], [0, 0, 1, 1], [], []>} : vector<32x3xf32>, vector<3x256xf32>, vector<32x256xf32> -> vector<32x256xf32>
    %c0_3 = arith.constant 0 : index
    %c0_4 = arith.constant 0 : index
    %3 = vector.load %arg3[%c0_3, %c0_4] : memref<32x1xf32, #tpu.memory_space<vmem>>, vector<32x1xf32>
    %4 = vector.broadcast %3 : vector<32x1xf32> to vector<32x256xf32>
    %5 = arith.addf %2, %4 : vector<32x256xf32>
    %cst_5 = arith.constant 0.000000e+00 : f32
    %6 = vector.broadcast %cst_5 : f32 to vector<32x256xf32>
    %7 = arith.maximumf %5, %6 : vector<32x256xf32>
    %c0_6 = arith.constant 0 : index
    %c0_7 = arith.constant 0 : index
    %8 = vector.load %arg4[%c0_6, %c0_7] : memref<16x32xf32, #tpu.memory_space<vmem>>, vector<16x32xf32>
    %cst_8 = arith.constant dense<0.000000e+00> : vector<16x256xf32>
    %9 = tpu.matmul %8, %7, %cst_8 {dimension_numbers = #tpu.dot_dimension_numbers<[1], [0], [0], [1], [0, 0, 1, 1], [], []>} : vector<16x32xf32>, vector<32x256xf32>, vector<16x256xf32> -> vector<16x256xf32>
    %c0_9 = arith.constant 0 : index
    %c0_10 = arith.constant 0 : index
    %10 = vector.load %arg5[%c0_9, %c0_10] : memref<16x1xf32, #tpu.memory_space<vmem>>, vector<16x1xf32>
    %11 = vector.broadcast %10 : vector<16x1xf32> to vector<16x256xf32>
    %12 = arith.addf %9, %11 : vector<16x256xf32>
    %cst_11 = arith.constant 0.000000e+00 : f32
    %13 = vector.broadcast %cst_11 : f32 to vector<16x256xf32>
    %14 = arith.maximumf %12, %13 : vector<16x256xf32>
    %c0_12 = arith.constant 0 : index
    %c0_13 = arith.constant 0 : index
    %15 = vector.load %arg6[%c0_12, %c0_13] : memref<1x16xf32, #tpu.memory_space<vmem>>, vector<1x16xf32>
    %cst_14 = arith.constant dense<0.000000e+00> : vector<1x256xf32>
    %16 = tpu.matmul %15, %14, %cst_14 {dimension_numbers = #tpu.dot_dimension_numbers<[1], [0], [0], [1], [0, 0, 1, 1], [], []>} : vector<1x16xf32>, vector<16x256xf32>, vector<1x256xf32> -> vector<1x256xf32>
    %c0_15 = arith.constant 0 : index
    %c0_16 = arith.constant 0 : index
    %17 = vector.load %arg7[%c0_15, %c0_16] : memref<1x1xf32, #tpu.memory_space<vmem>>, vector<1x1xf32>
    %18 = vector.broadcast %17 : vector<1x1xf32> to vector<1x256xf32>
    %19 = arith.addf %16, %18 : vector<1x256xf32>
    %c0_17 = arith.constant 0 : index
    %c0_18 = arith.constant 0 : index
    %20 = vector.load %arg8[%c0_17, %c0_18] : memref<1x256xf32, #tpu.memory_space<vmem>>, vector<1x256xf32>
    tpu.vector_store %arg8[%c0_17, %c0_18], %19 {strides = array<i32>} : memref<1x256xf32, #tpu.memory_space<vmem>>, vector<1x256xf32>,
    return
  }
  func.func @transform_0(%arg0: i32) -> (i32, i32) {
    %c0_i32 = arith.constant 0 : i32
    %c0_i32_0 = arith.constant 0 : i32
    return %c0_i32, %arg0 : i32, i32
  }
  func.func @transform_1(%arg0: i32) -> (i32, i32) {
    %c0_i32 = arith.constant 0 : i32
    %c0_i32_0 = arith.constant 0 : i32
    %c0_i32_1 = arith.constant 0 : i32
    return %c0_i32, %c0_i32_0 : i32, i32
  }
  func.func @transform_2(%arg0: i32) -> (i32, i32) {
    %c0_i32 = arith.constant 0 : i32
    %c0_i32_0 = arith.constant 0 : i32
    %c0_i32_1 = arith.constant 0 : i32
    return %c0_i32, %c0_i32_0 : i32, i32
  }
  func.func @transform_3(%arg0: i32) -> (i32, i32) {
    %c0_i32 = arith.constant 0 : i32
    %c0_i32_0 = arith.constant 0 : i32
    %c0_i32_1 = arith.constant 0 : i32
    return %c0_i32, %c0_i32_0 : i32, i32
  }
  func.func @transform_4(%arg0: i32) -> (i32, i32) {
    %c0_i32 = arith.constant 0 : i32
    %c0_i32_0 = arith.constant 0 : i32
    %c0_i32_1 = arith.constant 0 : i32
    return %c0_i32, %c0_i32_0 : i32, i32
  }
  func.func @transform_5(%arg0: i32) -> (i32, i32) {
    %c0_i32 = arith.constant 0 : i32
    %c0_i32_0 = arith.constant 0 : i32
    %c0_i32_1 = arith.constant 0 : i32
    return %c0_i32, %c0_i32_0 : i32, i32
  }
  func.func @transform_6(%arg0: i32) -> (i32, i32) {
    %c0_i32 = arith.constant 0 : i32
    %c0_i32_0 = arith.constant 0 : i32
    %c0_i32_1 = arith.constant 0 : i32
    return %c0_i32, %c0_i32_0 : i32, i32
  }
  func.func @transform_7(%arg0: i32) -> (i32, i32) {
    %c0_i32 = arith.constant 0 : i32
    %c0_i32_0 = arith.constant 0 : i32
    return %c0_i32, %arg0 : i32, i32
  }
}

</mosaic_0001>

<llo_original>
// kernel: fcn_apply.2
$region0: #{fcn_apply.2}
  #allocation0 [shape = 'u32[]', space=smem, size = 0x4, offset = 0x4, fixed_abs, tag = 'smem constant byte address 0x4 - core index']
  #allocation1 [shape = 'u32[72,128]{1,0:T(1,128)}', space=vmem, size = 0x9000, scoped, tag = 'internal scratch']
  #allocation2 [shape = 'f32[1,1]{1,0:T(1,128)S(1)}', space=vmem, size = 0x200, scoped, tag = 'scoped memory for fcn_apply.2']
  %s0 = inlined_call_operand.vmem [shape: f32[32,3], index: 0, kind: input, shape index: {}]
  %s1 = inlined_call_operand.vmem [shape: f32[32,1], index: 1, kind: input, shape index: {}]
  %s2 = inlined_call_operand.vmem [shape: f32[16,32], index: 2, kind: input, shape index: {}]
  %s3 = inlined_call_operand.vmem [shape: f32[16,1], index: 3, kind: input, shape index: {}]
  %s4 = inlined_call_operand.vmem [shape: f32[1,16], index: 4, kind: input, shape index: {}]
  %s5 = inlined_call_operand.<no memory space> [shape: f32[1,1], index: 5, kind: input, shape index: {}]
  %s6 = inlined_call_operand.vmem [shape: f32[256,3], index: 6, kind: input, shape index: {}]
  %s7 = inlined_call_operand.hbm [shape: f32[1,256], index: 7, kind: output, shape index: {}]
  %s8 = sld [smem:[#allocation0]]
  $region38: #{fcn_apply.2} parent=0
    _
  %s10 = ssub.s32 1, %s8
  %s11 = scalar_select 0, %s10, %s8
  %v12 = vstv %s5
  %13 = vst [vmem:[#allocation2] sm:$0x1] %v12
  $region1: #{fcn_apply.2} parent=0
    #allocation3 [shape = 'u8[1024]{0}', space=vmem, size = 0x400, scoped, tag = 'output window, operand 0, single buffered']
    #allocation4 [shape = 's32[1]{0}', space=sflag, size = 0x4, scoped, tag = 'scoped memory for fcn_apply.2']
    #allocation5 [shape = 'u8[4096]{0}', space=vmem, size = 0x1000, dematerialized = true, scoped, tag = 'FusionAdapter Buffer %fusion.1 = f32[3,256]{1,0:T(4,128)} fusion(%param_6.1), kind=kLoop, calls=%fused_computation.1.clone, metadata={op_name="jit(fcn_apply)/transpose" stack_frame_id=7}']
    %14 = vsyncpa [#allocation4], 0
    // Predicated region
    $region2: #{fcn_apply.2} parent=1 // pred_check
      _
    $region3: #{fcn_apply.2} parent=1 // pred_check_branch
      %16 = sbr.rel (0) target = $region5
    $region4: #{fcn_apply.2} parent=1 // pred_region
      _
    $region5: #{fcn_apply.2} parent=1 // pred_fallthru
      _
    // Predicated region
    $region6: #{fcn_apply.2} parent=1 // pred_check
      _
    $region7: #{fcn_apply.2} parent=1 // pred_check_branch
      %18 = sbr.rel (0) target = $region9
    $region8: #{fcn_apply.2} parent=1 // pred_region
      _
    $region9: #{fcn_apply.2} parent=1 // pred_fallthru
      _
    // Predicated region
    $region10: #{fcn_apply.2} parent=1 // pred_check
      _
    $region11: #{fcn_apply.2} parent=1 // pred_check_branch
      %20 = sbr.rel (0) target = $region13
    $region12: #{fcn_apply.2} parent=1 // pred_region
      _
    $region13: #{fcn_apply.2} parent=1 // pred_fallthru
      _
    // Predicated region
    $region14: #{fcn_apply.2} parent=1 // pred_check
      _
    $region15: #{fcn_apply.2} parent=1 // pred_check_branch
      %22 = sbr.rel (0) target = $region17
    $region16: #{fcn_apply.2} parent=1 // pred_region
      _
    $region17: #{fcn_apply.2} parent=1 // pred_fallthru
      _
    // Predicated region
    $region18: #{fcn_apply.2} parent=1 // pred_check
      _
    $region19: #{fcn_apply.2} parent=1 // pred_check_branch
      %24 = sbr.rel (0) target = $region21
    $region20: #{fcn_apply.2} parent=1 // pred_region
      _
    $region21: #{fcn_apply.2} parent=1 // pred_fallthru
      _
    // Predicated region
    $region22: #{fcn_apply.2} parent=1 // pred_check
      _
    $region23: #{fcn_apply.2} parent=1 // pred_check_branch
      %26 = sbr.rel (0) target = $region25
    $region24: #{fcn_apply.2} parent=1 // pred_region
      _
    $region25: #{fcn_apply.2} parent=1 // pred_fallthru
      _
    // Predicated region
    $region26: #{fcn_apply.2} parent=1 // pred_check
      _
    $region27: #{fcn_apply.2} parent=1 // pred_check_branch
      %28 = sbr.rel (0) target = $region29
    $region28: #{fcn_apply.2} parent=1 // pred_region
      _
    $region29: #{fcn_apply.2} parent=1 // pred_fallthru
      _
    %v29 = vld [vmem:[%s6] sm:$0x7]
    %s31 = ssub.s32 16, 1
    %32 = vst [vmem:[#allocation5] sm:%s31] %v29
    %s33 = scalar_lea.vmem %s6, 4
    %v34 = vld [vmem:[%s33] sm:$0x7]
    %s35 = scalar_lea.vmem [#allocation5], 4
    %s37 = ssub.s32 16, 1
    %38 = vst [vmem:[%s35] sm:%s37] %v34
    %v39 = vld [vmem:[%s0] sm:$0xff]
    %v40 = vld [vmem:[%s0 + $0x8] sm:$0xff]
    %v41 = vld [vmem:[%s0 + $0x10] sm:$0xff]
    %v42 = vld [vmem:[%s0 + $0x18] sm:$0xff]
    %v43 = vld [vmem:[#allocation5] sm:$0x77]
    %v44 = vld [vmem:[%s1] sm:$0xff]
    %v45 = vld [vmem:[%s1 + $0x8] sm:$0xff]
    %v46 = vld [vmem:[%s1 + $0x10] sm:$0xff]
    %v47 = vld [vmem:[%s1 + $0x18] sm:$0xff]
    %49 = vset.pattern.permute.xlu0 0
    %50 = vperm.xlu0 %49, %v44
    %v51 = vpop.permute.xlu0 %50
    %54 = vset.pattern.permute.xlu0 0
    %55 = vperm.xlu0 %54, %v45
    %v56 = vpop.permute.xlu0 %55
    %59 = vset.pattern.permute.xlu0 0
    %60 = vperm.xlu0 %59, %v46
    %v61 = vpop.permute.xlu0 %60
    %64 = vset.pattern.permute.xlu0 0
    %65 = vperm.xlu0 %64, %v47
    %v66 = vpop.permute.xlu0 %65
    %69 = vst [vmem:[#allocation1] ss:$2 sm:$0xff] %v43
    %v70 = vld.sshfl [vmem:[#allocation1] sm:$0xff pattern:$0x75316420]
    %v71 = vld.sshfl [vmem:[#allocation1 + $0x8] sm:$0xff pattern:$0x75316420]
    %vm72 = vcmask 23552
    %v74 = vsel %vm72, %v39, 0
    %v77 = vsel %vm72, %v40, 0
    %v80 = vsel %vm72, %v41, 0
    %v83 = vsel %vm72, %v42, 0
    %vm85 = vcmask 1042432
    %v86 = vsel %vm85, %v70, 0
    %v88 = vsel %vm85, %v71, 0
    %90 = vmatpush.msra.mxu0 0.0
    %91 = vmatpush.msra.mxu0 0.0
    %92 = vmatpush.msra.mxu0 0.0
    %93 = vmatpush.msra.mxu0 0.0
    %94 = vmatpush.msra.mxu0 0.0
    %95 = vmatpush.msra.mxu0 0.0
    %96 = vmatpush.msra.mxu0 0.0
    %97 = vmatpush.msra.mxu0 0.0
    %98 = vmatpush.msra.mxu0 0.0
    %99 = vmatpush.msra.mxu0 0.0
    %100 = vmatpush.msra.mxu0 0.0
    %101 = vmatpush.msra.mxu0 0.0
    %102 = vmatpush.msra.mxu0 0.0
    %103 = vmatpush.msra.mxu0 0.0
    %104 = vmatpush.msra.mxu0 0.0
    %105 = vmatpush.msra.mxu0 %v86
    %106 = vmatmul.f32.gmra.mxu0 %v74
    %v107 = vpop.f32.mrf.mxu0
    %v108 = vadd.f32 %v51, %v107
    %109 = vmatmul.f32.gmra.mxu0 %v77
    %v110 = vpop.f32.mrf.mxu0
    %v111 = vadd.f32 %v56, %v110
    %112 = vmatmul.f32.gmra.mxu0 %v80
    %v113 = vpop.f32.mrf.mxu0
    %v114 = vadd.f32 %v61, %v113
    %115 = vmatmul.f32.gmra.mxu0 %v83
    %v116 = vpop.f32.mrf.mxu0
    %v117 = vadd.f32 %v66, %v116
    %118 = vdwg.mxu0
    %119 = vmatpush.msra.mxu0 0.0
    %120 = vmatpush.msra.mxu0 0.0
    %121 = vmatpush.msra.mxu0 0.0
    %122 = vmatpush.msra.mxu0 0.0
    %123 = vmatpush.msra.mxu0 0.0
    %124 = vmatpush.msra.mxu0 0.0
    %125 = vmatpush.msra.mxu0 0.0
    %126 = vmatpush.msra.mxu0 0.0
    %127 = vmatpush.msra.mxu0 0.0
    %128 = vmatpush.msra.mxu0 0.0
    %129 = vmatpush.msra.mxu0 0.0
    %130 = vmatpush.msra.mxu0 0.0
    %131 = vmatpush.msra.mxu0 0.0
    %132 = vmatpush.msra.mxu0 0.0
    %133 = vmatpush.msra.mxu0 0.0
    %134 = vmatpush.msra.mxu0 %v88
    %135 = vmatmul.f32.gmra.mxu0 %v74
    %v136 = vpop.f32.mrf.mxu0
    %v137 = vadd.f32 %v51, %v136
    %138 = vmatmul.f32.gmra.mxu0 %v77
    %v139 = vpop.f32.mrf.mxu0
    %v140 = vadd.f32 %v56, %v139
    %141 = vmatmul.f32.gmra.mxu0 %v80
    %v142 = vpop.f32.mrf.mxu0
    %v143 = vadd.f32 %v61, %v142
    %144 = vmatmul.f32.gmra.mxu0 %v83
    %v145 = vpop.f32.mrf.mxu0
    %v146 = vadd.f32 %v66, %v145
    %147 = vdwg.mxu0
    %v148 = vmax.f32 %v108, 0.0
    %v149 = vmax.f32 %v137, 0.0
    %v150 = vmax.f32 %v111, 0.0
    %v151 = vmax.f32 %v140, 0.0
    %v152 = vmax.f32 %v114, 0.0
    %v153 = vmax.f32 %v143, 0.0
    %v154 = vmax.f32 %v117, 0.0
    %v155 = vmax.f32 %v146, 0.0
    %v156 = vld [vmem:[%s2] sm:$0xff]
    %v157 = vld [vmem:[%s2 + $0x8] sm:$0xff]
    %v158 = vld [vmem:[%s3] sm:$0xff]
    %v159 = vld [vmem:[%s3 + $0x8] sm:$0xff]
    %161 = vset.pattern.permute.xlu0 0
    %162 = vperm.xlu0 %161, %v158
    %v163 = vpop.permute.xlu0 %162
    %166 = vset.pattern.permute.xlu0 0
    %167 = vperm.xlu0 %166, %v159
    %v168 = vpop.permute.xlu0 %167
    %vm170 = vcmask 261120
    %v172 = vsel %vm170, %v156, 0
    %v175 = vsel %vm170, %v157, 0
    %177 = vmatpush.msra.mxu0 0.0
    %178 = vmatpush.msra.mxu0 0.0
    %179 = vmatpush.msra.mxu0 0.0
    %180 = vmatpush.msra.mxu0 0.0
    %181 = vmatpush.msra.mxu0 0.0
    %182 = vmatpush.msra.mxu0 0.0
    %183 = vmatpush.msra.mxu0 0.0
    %184 = vmatpush.msra.mxu0 0.0
    %185 = vmatpush.msra.mxu0 0.0
    %186 = vmatpush.msra.mxu0 0.0
    %187 = vmatpush.msra.mxu0 0.0
    %188 = vmatpush.msra.mxu0 0.0
    %189 = vmatpush.msra.mxu0 %v154
    %190 = vmatpush.msra.mxu0 %v152
    %191 = vmatpush.msra.mxu0 %v150
    %192 = vmatpush.msra.mxu0 %v148
    %193 = vmatmul.f32.gmra.mxu0 %v172
    %v194 = vpop.f32.mrf.mxu0
    %v195 = vadd.f32 %v163, %v194
    %196 = vmatmul.f32.gmra.mxu0 %v175
    %v197 = vpop.f32.mrf.mxu0
    %v198 = vadd.f32 %v168, %v197
    %199 = vdwg.mxu0
    %200 = vmatpush.msra.mxu0 0.0
    %201 = vmatpush.msra.mxu0 0.0
    %202 = vmatpush.msra.mxu0 0.0
    %203 = vmatpush.msra.mxu0 0.0
    %204 = vmatpush.msra.mxu0 0.0
    %205 = vmatpush.msra.mxu0 0.0
    %206 = vmatpush.msra.mxu0 0.0
    %207 = vmatpush.msra.mxu0 0.0
    %208 = vmatpush.msra.mxu0 0.0
    %209 = vmatpush.msra.mxu0 0.0
    %210 = vmatpush.msra.mxu0 0.0
    %211 = vmatpush.msra.mxu0 0.0
    %212 = vmatpush.msra.mxu0 %v155
    %213 = vmatpush.msra.mxu0 %v153
    %214 = vmatpush.msra.mxu0 %v151
    %215 = vmatpush.msra.mxu0 %v149
    %216 = vmatmul.f32.gmra.mxu0 %v172
    %v217 = vpop.f32.mrf.mxu0
    %v218 = vadd.f32 %v163, %v217
    %219 = vmatmul.f32.gmra.mxu0 %v175
    %v220 = vpop.f32.mrf.mxu0
    %v221 = vadd.f32 %v168, %v220
    %222 = vdwg.mxu0
    %v223 = vmax.f32 %v195, 0.0
    %v224 = vmax.f32 %v218, 0.0
    %v225 = vmax.f32 %v198, 0.0
    %v226 = vmax.f32 %v221, 0.0
    %v227 = vld [vmem:[%s4] sm:$0x1]
    %v228 = vld [vmem:[#allocation2] sm:$0x1]
    %230 = vset.pattern.permute.xlu0 0
    %231 = vperm.xlu0 %230, %v228
    %v232 = vpop.permute.xlu0 %231
    %v234 = vperm.slane %v232, 0
    %vm235 = vcmask 130048
    %v237 = vsel %vm235, %v227, 0
    %239 = vmatpush.msra.mxu0 0.0
    %240 = vmatpush.msra.mxu0 0.0
    %241 = vmatpush.msra.mxu0 0.0
    %242 = vmatpush.msra.mxu0 0.0
    %243 = vmatpush.msra.mxu0 0.0
    %244 = vmatpush.msra.mxu0 0.0
    %245 = vmatpush.msra.mxu0 0.0
    %246 = vmatpush.msra.mxu0 0.0
    %247 = vmatpush.msra.mxu0 0.0
    %248 = vmatpush.msra.mxu0 0.0
    %249 = vmatpush.msra.mxu0 0.0
    %250 = vmatpush.msra.mxu0 0.0
    %251 = vmatpush.msra.mxu0 0.0
    %252 = vmatpush.msra.mxu0 0.0
    %253 = vmatpush.msra.mxu0 %v225
    %254 = vmatpush.msra.mxu0 %v223
    %255 = vmatmul.f32.gmra.mxu0 %v237
    %v256 = vpop.f32.mrf.mxu0
    %v257 = vadd.f32 %v234, %v256
    %258 = vdwg.mxu0
    %259 = vmatpush.msra.mxu0 0.0
    %260 = vmatpush.msra.mxu0 0.0
    %261 = vmatpush.msra.mxu0 0.0
    %262 = vmatpush.msra.mxu0 0.0
    %263 = vmatpush.msra.mxu0 0.0
    %264 = vmatpush.msra.mxu0 0.0
    %265 = vmatpush.msra.mxu0 0.0
    %266 = vmatpush.msra.mxu0 0.0
    %267 = vmatpush.msra.mxu0 0.0
    %268 = vmatpush.msra.mxu0 0.0
    %269 = vmatpush.msra.mxu0 0.0
    %270 = vmatpush.msra.mxu0 0.0
    %271 = vmatpush.msra.mxu0 0.0
    %272 = vmatpush.msra.mxu0 0.0
    %273 = vmatpush.msra.mxu0 %v226
    %274 = vmatpush.msra.mxu0 %v224
    %275 = vmatmul.f32.gmra.mxu0 %v237
    %v276 = vpop.f32.mrf.mxu0
    %v277 = vadd.f32 %v234, %v276
    %278 = vdwg.mxu0
    %v281 = vrot.slane %v277, 7
    %vm282 = vcmask 1040384
    %v283 = vsel %vm282, %v257, %v281
    %v285 = vlaneseq
    %vm286 = vcmp.ge.s32.totalorder %v285, 0
    %vm287 = vcmp.lt.s32.totalorder %v285, 256
    %vm288 = vmand %vm286, %vm287
    %289 = vst.msk [vmem:[#allocation3] sm:$0x3] %vm288, %v283
    // Predicated region
    $region30: #{fcn_apply.2} parent=1 // pred_check
      _
    $region31: #{fcn_apply.2} parent=1 // pred_check_branch
      %291 = sbr.rel (0) target = $region33
    $region32: #{fcn_apply.2} parent=1 // pred_region
      %293 = vsyncadd [#allocation4], 0
      %s295 = sshll.u32 [#allocation3], 4
      %s296 = int_to_ptr.vmem [resolvable:$true] %s295
      %s297 = sshll.u32 %s7, 4
      %s298 = int_to_ptr.hbm [resolvable:$true] %s297
      %300 = dma.vmem_to_hbm [thread:$0]  %s296, 32, %s298, [#allocation4]
    $region33: #{fcn_apply.2} parent=1 // pred_fallthru
      _
    // Predicated region
    $region34: #{fcn_apply.2} parent=1 // pred_check
      _
    $region35: #{fcn_apply.2} parent=1 // pred_check_branch
      %302 = sbr.rel (0) target = $region37
    $region36: #{fcn_apply.2} parent=1 // pred_region
      %304 = dma.done [#allocation4], 32
    $region37: #{fcn_apply.2} parent=1 // pred_fallthru
      _
    %305 = vsyncpa [#allocation4], 1

</llo_original>
